<compile_context>
chip_gen: v7x
topology: tpu7x:2x2x1
jax: 0.10.0
libtpu: 0.0.40
codegen_flags: <defaults>
</compile_context>

<pallas_src>
import functools

import jax
import jax.numpy as jnp
from jax.experimental import pallas as pl
from jax.experimental.pallas import tpu as pltpu


def _round_up(x, m):
    return (x + m - 1) // m * m


def _vmem_capacity_bytes():
    """Physical VMEM per TensorCore; conservative 64 MiB if the query fails."""
    try:
        cap = int(getattr(pltpu.get_tpu_info(), "vmem_capacity_bytes", 0))
        if cap > 0:
            return cap
    except Exception:  # hardware query only; never affects kernel semantics
        pass
    return 64 << 20


def _pick_block_m(m, dtype, vmem_cap):
    """Chip-aware row-tile size (bigger on 128-MiB VMEM parts)."""
    pack = 16 if jnp.dtype(dtype).itemsize == 2 else 8
    if vmem_cap >= (100 << 20):                      # v5e / v6e: 128 MiB VMEM
        bm = 1024 if jnp.dtype(dtype).itemsize == 2 else 512
    else:                                            # v7x: 64 MiB per TC
        bm = 512 if jnp.dtype(dtype).itemsize == 2 else 256
    bm = min(bm, _round_up(m, pack))
    # Megacore (v7x): prefer >= 2 row tiles so both TensorCores get work.
    if m > 2 * pack and pl.cdiv(m, bm) < 2:
        bm = _round_up(pl.cdiv(m, 2), pack)
    return bm, pack


def _fit_block_m(bm, pack, per_row_bytes, fixed_bytes, budget_bytes):
    """Shrink bm (keeping it a multiple of `pack`) until the VMEM need fits."""
    while bm > pack and fixed_bytes + bm * per_row_bytes > budget_bytes:
        bm = max(pack, _round_up(bm // 2, pack))
    return bm


def _vmem_limit(fixed_bytes, per_row_bytes, bm, vmem_cap):
    limit = int(1.25 * (fixed_bytes + bm * per_row_bytes)) + (4 << 20)
    limit = max(limit, 32 << 20)
    return min(limit, int(0.9 * vmem_cap))


# --------------------------------------------------------------------------
# Fused single-matmul path (activation='none'):  y = x @ W_fused + b_fused
# --------------------------------------------------------------------------

def fuse_linear_params(w1, b1, w2, b2, dtype=None):
    """Collapse Linear -> identity -> Linear into one linear map (f32 math).

    Do this ONCE at parameter-setup / weight-load time, not per forward call.
    """
    if dtype is None:
        dtype = w1.dtype
    w1f, w2f = w1.astype(jnp.float32), w2.astype(jnp.float32)
    w_fused = (w1f @ w2f).astype(dtype)
    b_fused = (b1.astype(jnp.float32) @ w2f + b2.astype(jnp.float32)).astype(dtype)
    return w_fused, b_fused


def _fused_linear_kernel(x_ref, w_ref, b_ref, o_ref):
    # Single MXU matmul, f32 accumulation, + bias, cast back to output dtype.
    y = jnp.dot(x_ref[...], w_ref[...], preferred_element_type=jnp.float32)
    y = y + b_ref[...].astype(jnp.float32)
    o_ref[...] = y.astype(o_ref.dtype)


@functools.partial(jax.jit, static_argnames=("block_m", "vmem_limit"))
def _fused_linear_call(x, w, b, *, block_m, vmem_limit):
    m, d_in = x.shape
    d_out = w.shape[1]
    cost = pl.CostEstimate(
        flops=2 * m * d_in * d_out,
        transcendentals=0,
        bytes_accessed=(x.size * x.dtype.itemsize + w.size * w.dtype.itemsize
                        + b.size * b.dtype.itemsize
                        + m * d_out * x.dtype.itemsize),
    )
    return pl.pallas_call(
        _fused_linear_kernel,
        out_shape=jax.ShapeDtypeStruct((m, d_out), x.dtype),
        grid=(pl.cdiv(m, block_m),),
        in_specs=[
            pl.BlockSpec((block_m, d_in), lambda i: (i, 0)),   # streamed x tile
            pl.BlockSpec((d_in, d_out), lambda i: (0, 0)),     # resident W_fused
            pl.BlockSpec((1, d_out), lambda i: (0, 0)),        # resident b_fused
        ],
        out_specs=pl.BlockSpec((block_m, d_out), lambda i: (i, 0)),
        compiler_params=pltpu.CompilerParams(
            dimension_semantics=("parallel",),
            vmem_limit_bytes=vmem_limit,
        ),
        cost_estimate=cost,
    )(x, w, b)


def mlp_forward_fused(x, w_fused, b_fused, *, block_m=None):
    """Optimized MLP forward for the default config (activation='none')."""
    assert x.ndim == 2
    m, d_in = x.shape
    d_out = w_fused.shape[1]
    assert w_fused.shape == (d_in, d_out) and b_fused.shape == (1, d_out)
    if w_fused.dtype != x.dtype:
        w_fused = w_fused.astype(x.dtype)
    if b_fused.dtype != x.dtype:
        b_fused = b_fused.astype(x.dtype)

    vmem_cap = _vmem_capacity_bytes()
    if block_m is None:
        bm, pack = _pick_block_m(m, x.dtype, vmem_cap)
    else:
        pack = 16 if jnp.dtype(x.dtype).itemsize == 2 else 8
        bm = _round_up(min(block_m, _round_up(m, pack)), pack)

    itemsize = jnp.dtype(x.dtype).itemsize
    fixed = 2 * (d_in * d_out + d_out) * itemsize           # resident W/b (2 bufs)
    per_row = 2 * (d_in + d_out) * itemsize + d_out * 4     # 2x(x,out) tiles + f32 y
    bm = _fit_block_m(bm, pack, per_row, fixed, int(0.8 * vmem_cap))
    vmem_limit = _vmem_limit(fixed, per_row, bm, vmem_cap)
    return _fused_linear_call(x, w_fused, b_fused, block_m=bm,
                              vmem_limit=vmem_limit)


# --------------------------------------------------------------------------
# General two-matmul path (for activation != 'none'):
#   y = act(x @ W1 + b1) @ W2 + b2
# --------------------------------------------------------------------------

_ACTIVATIONS = {
    "none": lambda h: h,
    "relu": lambda h: jnp.maximum(h, 0.0),
    "tanh": jnp.tanh,
    "sigmoid": jax.nn.sigmoid,
}


@functools.partial(jax.jit,
                   static_argnames=("block_m", "vmem_limit", "activation"))
def _mlp2_call(x, w1, b1, w2, b2, *, block_m, vmem_limit, activation):
    m, d_in = x.shape
    d_hid = w1.shape[1]
    d_out = w2.shape[1]
    act = _ACTIVATIONS[activation]

    def kernel(x_ref, w1_ref, b1_ref, w2_ref, b2_ref, o_ref):
        h = jnp.dot(x_ref[...], w1_ref[...], preferred_element_type=jnp.float32)
        h = act(h + b1_ref[...].astype(jnp.float32))
        y = jnp.dot(h.astype(w2_ref.dtype), w2_ref[...],
                    preferred_element_type=jnp.float32)
        o_ref[...] = (y + b2_ref[...].astype(jnp.float32)).astype(o_ref.dtype)

    cost = pl.CostEstimate(
        flops=2 * m * (d_in * d_hid + d_hid * d_out),
        transcendentals=(m * d_hid if activation in ("tanh", "sigmoid") else 0),
        bytes_accessed=((x.size + w1.size + b1.size + w2.size + b2.size
                         + m * d_out) * x.dtype.itemsize),
    )
    return pl.pallas_call(
        kernel,
        out_shape=jax.ShapeDtypeStruct((m, d_out), x.dtype),
        grid=(pl.cdiv(m, block_m),),
        in_specs=[
            pl.BlockSpec((block_m, d_in), lambda i: (i, 0)),   # streamed x tile
            pl.BlockSpec((d_in, d_hid), lambda i: (0, 0)),     # resident W1
            pl.BlockSpec((1, d_hid), lambda i: (0, 0)),        # resident b1
            pl.BlockSpec((d_hid, d_out), lambda i: (0, 0)),    # resident W2
            pl.BlockSpec((1, d_out), lambda i: (0, 0)),        # resident b2
        ],
        out_specs=pl.BlockSpec((block_m, d_out), lambda i: (i, 0)),
        compiler_params=pltpu.CompilerParams(
            dimension_semantics=("parallel",),
            vmem_limit_bytes=vmem_limit,
        ),
        cost_estimate=cost,
    )(x, w1, b1, w2, b2)


def mlp_forward(x, w1, b1, w2, b2, *, activation="none", block_m=None):
    """General 2-layer MLP forward.  For the module's default
    activation='none', prefer fuse_linear_params + mlp_forward_fused."""
    assert x.ndim == 2
    if activation not in _ACTIVATIONS:
        raise ValueError(f"unsupported activation: {activation}")
    m, d_in = x.shape
    d_hid = w1.shape[1]
    d_out = w2.shape[1]
    assert w1.shape == (d_in, d_hid) and b1.shape == (1, d_hid)
    assert w2.shape == (d_hid, d_out) and b2.shape == (1, d_out)

    dtype = x.dtype
    w1, b1, w2, b2 = tuple(a if a.dtype == dtype else a.astype(dtype)
                           for a in (w1, b1, w2, b2))

    vmem_cap = _vmem_capacity_bytes()
    if block_m is None:
        bm, pack = _pick_block_m(m, dtype, vmem_cap)
    else:
        pack = 16 if jnp.dtype(dtype).itemsize == 2 else 8
        bm = _round_up(min(block_m, _round_up(m, pack)), pack)

    itemsize = jnp.dtype(dtype).itemsize
    fixed = 2 * (d_in * d_hid + d_hid * d_out + d_hid + d_out) * itemsize
    per_row = 2 * (d_in + d_out) * itemsize + (d_hid + d_out) * 4
    # TODO(synk): if `fixed` alone exceeds ~0.8*VMEM (very large W1/W2), add a
    # hidden-dim grid axis with a (bm, d_out) f32 accumulator + pl.when
    # init/finalize instead of keeping both weights fully resident.
    bm = _fit_block_m(bm, pack, per_row, fixed, int(0.8 * vmem_cap))
    vmem_limit = _vmem_limit(fixed, per_row, bm, vmem_cap)
    return _mlp2_call(x, w1, b1, w2, b2, block_m=bm,
                      vmem_limit=vmem_limit, activation=activation)


def init_linear_params(key, fan_in, fan_out, dtype=jnp.float32):
    # Spirit of init_weight(..., init='uniform'): U(-1/sqrt(fan_in), +),
    # stored as (fan_in, fan_out) = W.T so the kernel does x @ W directly.
    kw, kb = jax.random.split(key)
    bound = 1.0 / jnp.sqrt(jnp.float32(fan_in))
    w = jax.random.uniform(kw, (fan_in, fan_out), dtype, -bound, bound)
    b = jax.random.uniform(kb, (1, fan_out), dtype, -bound, bound)
    return w, b


if __name__ == "__main__":
    # Small shapes consistent with MLP(input_dim, hidden_dim, output_dim);
    # batch=10 deliberately not a multiple of 8 to exercise ragged-M masking.
    batch, input_dim, hidden_dim, output_dim = 10, 16, 32, 16

    key = jax.random.PRNGKey(0)
    kx, k1, k2 = jax.random.split(key, 3)
    x = jax.random.normal(kx, (batch, input_dim), jnp.float32)
    w1, b1 = init_linear_params(k1, input_dim, hidden_dim)
    w2, b2 = init_linear_params(k2, hidden_dim, output_dim)

    ref = (x @ w1 + b1) @ w2 + b2   # identity activation, no norm

    # --- default module config (activation='none'): fused single matmul ----
    w_f32, b_f32 = fuse_linear_params(w1, b1, w2, b2, jnp.float32)
    out = jax.block_until_ready(mlp_forward_fused(x, w_f32, b_f32))
    assert out.shape == (batch, output_dim) and out.dtype == x.dtype
    assert jnp.allclose(out, ref, atol=1e-4, rtol=1e-4), "fused f32 mismatch"

    # --- bf16 fused path (v6e/v7x throughput dtype; f32 MXU accumulation) --
    w_bf, b_bf = fuse_linear_params(w1, b1, w2, b2, jnp.bfloat16)
    xb = x.astype(jnp.bfloat16)
    out_bf = jax.block_until_ready(mlp_forward_fused(xb, w_bf, b_bf))
    ref_bf = (xb.astype(jnp.float32) @ w_bf.astype(jnp.float32)
              + b_bf.astype(jnp.float32))
    assert out_bf.dtype == jnp.bfloat16
    assert jnp.allclose(out_bf.astype(jnp.float32), ref_bf,
                        atol=2e-2, rtol=2e-2), "fused bf16 mismatch"

    # --- non-default activation exercises the general two-matmul kernel ----
    out_relu = jax.block_until_ready(
        mlp_forward(x, w1, b1, w2, b2, activation="relu"))
    ref_relu = jnp.maximum(x @ w1 + b1, 0.0) @ w2 + b2
    assert jnp.allclose(out_relu, ref_relu, atol=1e-5, rtol=1e-5), "relu mismatch"

    print("KERNEL_OK")
</pallas_src>

<mosaic_0001>
module attributes {stable_mosaic.version = 11 : i64} {
  func.func @_fused_linear_kernel(%arg0: i32, %arg1: memref<16x16xf32, #tpu.memory_space<vmem>>, %arg2: memref<16x16xf32, #tpu.memory_space<vmem>>, %arg3: memref<1x16xf32, #tpu.memory_space<vmem>>, %arg4: memref<16x16xf32, #tpu.memory_space<vmem>>) attributes {dimension_semantics = [#tpu.dimension_semantics<parallel>], iteration_bounds = array<i64: 1>, scalar_prefetch = 0 : i64, scratch_operands = 0 : i64, tpu.core_type = #tpu.core_type<tc>, window_params = [{transform_indices = @transform_0, window_bounds = array<i64: 16, 16>}, {pipeline_mode = #tpu.pipeline_mode<synchronous>, transform_indices = @transform_1, window_bounds = array<i64: 16, 16>}, {pipeline_mode = #tpu.pipeline_mode<synchronous>, transform_indices = @transform_2, window_bounds = array<i64: 1, 16>}, {transform_indices = @transform_3, window_bounds = array<i64: 16, 16>}]} {
    %c0 = arith.constant 0 : index
    %c0_0 = arith.constant 0 : index
    %0 = vector.load %arg1[%c0, %c0_0] : memref<16x16xf32, #tpu.memory_space<vmem>>, vector<16x16xf32>
    %c0_1 = arith.constant 0 : index
    %c0_2 = arith.constant 0 : index
    %1 = vector.load %arg2[%c0_1, %c0_2] : memref<16x16xf32, #tpu.memory_space<vmem>>, vector<16x16xf32>
    %cst = arith.constant dense<0.000000e+00> : vector<16x16xf32>
    %2 = tpu.matmul %0, %1, %cst {dimension_numbers = #tpu.dot_dimension_numbers<[1], [0], [0], [1], [0, 0, 1, 1], [], []>} : vector<16x16xf32>, vector<16x16xf32>, vector<16x16xf32> -> vector<16x16xf32>
    %c0_3 = arith.constant 0 : index
    %c0_4 = arith.constant 0 : index
    %3 = vector.load %arg3[%c0_3, %c0_4] : memref<1x16xf32, #tpu.memory_space<vmem>>, vector<1x16xf32>
    %4 = vector.broadcast %3 : vector<1x16xf32> to vector<16x16xf32>
    %5 = arith.addf %2, %4 : vector<16x16xf32>
    %c0_5 = arith.constant 0 : index
    %c0_6 = arith.constant 0 : index
    %6 = vector.load %arg4[%c0_5, %c0_6] : memref<16x16xf32, #tpu.memory_space<vmem>>, vector<16x16xf32>
    tpu.vector_store %arg4[%c0_5, %c0_6], %5 {strides = array<i32>} : memref<16x16xf32, #tpu.memory_space<vmem>>, vector<16x16xf32>,
    return
  }
  func.func @transform_0(%arg0: i32) -> (i32, i32) {
    %c0_i32 = arith.constant 0 : i32
    %c0_i32_0 = arith.constant 0 : i32
    return %arg0, %c0_i32 : i32, i32
  }
  func.func @transform_1(%arg0: i32) -> (i32, i32) {
    %c0_i32 = arith.constant 0 : i32
    %c0_i32_0 = arith.constant 0 : i32
    %c0_i32_1 = arith.constant 0 : i32
    return %c0_i32, %c0_i32_0 : i32, i32
  }
  func.func @transform_2(%arg0: i32) -> (i32, i32) {
    %c0_i32 = arith.constant 0 : i32
    %c0_i32_0 = arith.constant 0 : i32
    %c0_i32_1 = arith.constant 0 : i32
    return %c0_i32, %c0_i32_0 : i32, i32
  }
  func.func @transform_3(%arg0: i32) -> (i32, i32) {
    %c0_i32 = arith.constant 0 : i32
    %c0_i32_0 = arith.constant 0 : i32
    return %arg0, %c0_i32 : i32, i32
  }
}

</mosaic_0001>

<llo_original>
// kernel: _fused_linear_call.1
$region0: #{_fused_linear_call.1}
  #allocation0 [shape = 'u32[]', space=smem, size = 0x4, offset = 0x4, fixed_abs, tag = 'smem constant byte address 0x4 - core index']
  #allocation1 [shape = 'u32[144,128]{1,0:T(1,128)}', space=vmem, size = 0x12000, scoped, tag = 'internal scratch']
  %s0 = inlined_call_operand.hbm [shape: f32[10,16], index: 0, kind: input, shape index: {}]
  %s1 = inlined_call_operand.hbm [shape: f32[16,16], index: 1, kind: input, shape index: {}]
  %s2 = inlined_call_operand.vmem [shape: f32[1,16], index: 2, kind: input, shape index: {}]
  %s3 = inlined_call_operand.hbm [shape: f32[10,16], index: 3, kind: output, shape index: {}]
  %s4 = sld [smem:[#allocation0]]
  $region30: #{_fused_linear_call.1} parent=0
    _
  %s6 = ssub.s32 1, %s4
  %s7 = scalar_select 0, %s6, %s4
  $region1: #{_fused_linear_call.1} parent=0
    #allocation2 [shape = 'u8[8192]{0}', space=vmem, size = 0x2000, scoped, tag = 'input window, operand 0, single buffered']
    #allocation3 [shape = 's32[1]{0}', space=sflag, size = 0x4, scoped, tag = 'scoped memory for _fused_linear_call.1']
    #allocation4 [shape = 's32[1]{0}', space=sflag, size = 0x4, scoped, tag = 'scoped memory for _fused_linear_call.1']
    #allocation5 [shape = 'u8[8192]{0}', space=vmem, size = 0x2000, scoped, tag = 'input window, operand 1, single buffered']
    #allocation6 [shape = 's32[1]{0}', space=sflag, size = 0x4, scoped, tag = 'scoped memory for _fused_linear_call.1']
    #allocation7 [shape = 'u8[8192]{0}', space=vmem, size = 0x2000, scoped, tag = 'output window, operand 0, single buffered']
    %8 = vsyncpa [#allocation3], 0
    %9 = vsyncpa [#allocation6], 0
    %10 = vsyncpa [#allocation4], 0
    // Predicated region
    $region2: #{_fused_linear_call.1} parent=1 // pred_check
      _
    $region3: #{_fused_linear_call.1} parent=1 // pred_check_branch
      %12 = sbr.rel (0) target = $region5
    $region4: #{_fused_linear_call.1} parent=1 // pred_region
      %s14 = ssub.s32 256, 256
      %15 = vsyncadd [#allocation3], %s14
      %s16 = sshll.u32 [#allocation2], 4
      %s17 = int_to_ptr.vmem [resolvable:$true] %s16
      %22 = dma.hbm_to_vmem [thread:$0]  %s0, 256, %s17, [#allocation3], 128, 128, 8
    $region5: #{_fused_linear_call.1} parent=1 // pred_fallthru
      _
    // Predicated region
    $region6: #{_fused_linear_call.1} parent=1 // pred_check
      _
    $region7: #{_fused_linear_call.1} parent=1 // pred_check_branch
      %24 = sbr.rel (0) target = $region9
    $region8: #{_fused_linear_call.1} parent=1 // pred_region
      %s26 = ssub.s32 256, 256
      %27 = vsyncadd [#allocation6], %s26
      %s28 = sshll.u32 [#allocation5], 4
      %s29 = int_to_ptr.vmem [resolvable:$true] %s28
      %34 = dma.hbm_to_vmem [thread:$0]  %s1, 256, %s29, [#allocation6], 128, 128, 8
    $region9: #{_fused_linear_call.1} parent=1 // pred_fallthru
      _
    // Predicated region
    $region10: #{_fused_linear_call.1} parent=1 // pred_check
      _
    $region11: #{_fused_linear_call.1} parent=1 // pred_check_branch
      %36 = sbr.rel (0) target = $region13
    $region12: #{_fused_linear_call.1} parent=1 // pred_region
      _
    $region13: #{_fused_linear_call.1} parent=1 // pred_fallthru
      _
    // Predicated region
    $region14: #{_fused_linear_call.1} parent=1 // pred_check
      _
    $region15: #{_fused_linear_call.1} parent=1 // pred_check_branch
      %38 = sbr.rel (0) target = $region17
    $region16: #{_fused_linear_call.1} parent=1 // pred_region
      %39 = dma.done [#allocation3], 256
    $region17: #{_fused_linear_call.1} parent=1 // pred_fallthru
      _
    // Predicated region
    $region18: #{_fused_linear_call.1} parent=1 // pred_check
      _
    $region19: #{_fused_linear_call.1} parent=1 // pred_check_branch
      %41 = sbr.rel (0) target = $region21
    $region20: #{_fused_linear_call.1} parent=1 // pred_region
      %42 = dma.done [#allocation6], 256
    $region21: #{_fused_linear_call.1} parent=1 // pred_fallthru
      _
    %v43 = vld [vmem:[#allocation2] sm:$0xff]
    %v44 = vld [vmem:[#allocation2 + $0x8] sm:$0xff]
    %v45 = vld [vmem:[#allocation5] sm:$0xff]
    %v46 = vld [vmem:[#allocation5 + $0x8] sm:$0xff]
    %v47 = vld [vmem:[%s2] sm:$0x1]
    %v49 = vlaneseq
    %v50 = vshrl.u32 %v49, 7
    %v51 = vsub.s32 0, %v50
    %v52 = vrot.slane %v47, %v51
    %vm54 = vcmask 130048
    %v56 = vsel %vm54, %v43, 0
    %v59 = vsel %vm54, %v44, 0
    %61 = vmatprep.subr.mxu0 0.0
    %62 = vmatpush1.msra.mxu0 %v45
    %63 = vmatprep.subr.mxu0 0.0
    %64 = vmatpush1.msra.mxu0 %v46
    %65 = vmatprep.subr.mxu0 0.0
    %66 = vmatpush1.msra.mxu0 0.0
    %67 = vmatprep.subr.mxu0 0.0
    %68 = vmatpush1.msra.mxu0 0.0
    %69 = vmatprep.subr.mxu0 0.0
    %70 = vmatpush1.msra.mxu0 0.0
    %71 = vmatprep.subr.mxu0 0.0
    %72 = vmatpush1.msra.mxu0 0.0
    %73 = vmatprep.subr.mxu0 0.0
    %74 = vmatpush1.msra.mxu0 0.0
    %75 = vmatprep.subr.mxu0 0.0
    %76 = vmatpush1.msra.mxu0 0.0
    %77 = vmatprep.subr.mxu0 0.0
    %78 = vmatpush1.msra.mxu0 0.0
    %79 = vmatprep.subr.mxu0 0.0
    %80 = vmatpush1.msra.mxu0 0.0
    %81 = vmatprep.subr.mxu0 0.0
    %82 = vmatpush1.msra.mxu0 0.0
    %83 = vmatprep.subr.mxu0 0.0
    %84 = vmatpush1.msra.mxu0 0.0
    %85 = vmatprep.subr.mxu0 0.0
    %86 = vmatpush1.msra.mxu0 0.0
    %87 = vmatprep.subr.mxu0 0.0
    %88 = vmatpush1.msra.mxu0 0.0
    %89 = vmatprep.subr.mxu0 0.0
    %90 = vmatpush1.msra.mxu0 0.0
    %91 = vmatprep.subr.mxu0 0.0
    %92 = vmatpush1.msra.mxu0 0.0
    %93 = vmatprep.subr.mxu0 0.0
    %94 = vmatpush1.msra.mxu0 0.0
    %95 = vmatprep.subr.mxu0 0.0
    %96 = vmatpush1.msra.mxu0 0.0
    %97 = vmatprep.subr.mxu0 0.0
    %98 = vmatpush1.msra.mxu0 0.0
    %99 = vmatprep.subr.mxu0 0.0
    %100 = vmatpush1.msra.mxu0 0.0
    %101 = vmatprep.subr.mxu0 0.0
    %102 = vmatpush1.msra.mxu0 0.0
    %103 = vmatprep.subr.mxu0 0.0
    %104 = vmatpush1.msra.mxu0 0.0
    %105 = vmatprep.subr.mxu0 0.0
    %106 = vmatpush1.msra.mxu0 0.0
    %107 = vmatprep.subr.mxu0 0.0
    %108 = vmatpush1.msra.mxu0 0.0
    %109 = vmatprep.subr.mxu0 0.0
    %110 = vmatpush1.msra.mxu0 0.0
    %111 = vmatprep.subr.mxu0 0.0
    %112 = vmatpush1.msra.mxu0 0.0
    %113 = vmatprep.subr.mxu0 0.0
    %114 = vmatpush1.msra.mxu0 0.0
    %115 = vmatprep.subr.mxu0 0.0
    %116 = vmatpush1.msra.mxu0 0.0
    %117 = vmatprep.subr.mxu0 0.0
    %118 = vmatpush1.msra.mxu0 0.0
    %119 = vmatprep.subr.mxu0 0.0
    %120 = vmatpush1.msra.mxu0 0.0
    %121 = vmatprep.subr.mxu0 0.0
    %122 = vmatpush1.msra.mxu0 0.0
    %123 = vmatprep.subr.mxu0 0.0
    %124 = vmatpush1.msra.mxu0 0.0
    %125 = vmatprep.mubr.f32.mxu0 0.0
    %126 = vmatmul.mubr.f32.gmra.mrb[0].mxu0 %v56
    %v127 = vpop.f32.mrb[0].mxu0
    %v128 = vadd.f32 %v52, %v127
    %v129 = vpop.f32.mrb[0].mxu0
    %130 = vmatprep.mubr.f32.mxu0 0.0
    %131 = vmatmul.mubr.f32.gmra.mrb[0].mxu0 %v59
    %v132 = vpop.f32.mrb[0].mxu0
    %v133 = vadd.f32 %v52, %v132
    %v134 = vpop.f32.mrb[0].mxu0
    %135 = vdwg.mxu0
    %136 = vst.msk [vmem:[#allocation7] sm:$0xff] %vm54, %v128
    %137 = vst.msk [vmem:[#allocation7 + $0x8] sm:$0xff] %vm54, %v133
    // Predicated region
    $region22: #{_fused_linear_call.1} parent=1 // pred_check
      _
    $region23: #{_fused_linear_call.1} parent=1 // pred_check_branch
      %139 = sbr.rel (0) target = $region25
    $region24: #{_fused_linear_call.1} parent=1 // pred_region
      %s141 = ssub.s32 256, 256
      %142 = vsyncadd [#allocation4], %s141
      %s143 = sshll.u32 [#allocation7], 4
      %s144 = int_to_ptr.vmem [resolvable:$true] %s143
      %149 = dma.vmem_to_hbm [thread:$0]  %s144, 256, %s3, [#allocation4], 128, 128, 8
    $region25: #{_fused_linear_call.1} parent=1 // pred_fallthru
      _
    // Predicated region
    $region26: #{_fused_linear_call.1} parent=1 // pred_check
      _
    $region27: #{_fused_linear_call.1} parent=1 // pred_check_branch
      %151 = sbr.rel (0) target = $region29
    $region28: #{_fused_linear_call.1} parent=1 // pred_region
      %152 = dma.done [#allocation4], 256
    $region29: #{_fused_linear_call.1} parent=1 // pred_fallthru
      _
    %153 = vsyncpa [#allocation3], 1
    %154 = vsyncpa [#allocation6], 1
    %155 = vsyncpa [#allocation4], 1

</llo_original>
